<compile_context>
chip_gen: v5e
topology: v5e:2x2
jax: 0.10.0
libtpu: 0.0.40
codegen_flags: <defaults>
</compile_context>

<pallas_src>
import jax
import jax.numpy as jnp
from jax import lax
from jax.experimental import pallas as pl
from jax.experimental.pallas import tpu as pltpu

LANE = 128
SUBLANE = 8
EPS = 1e-8


def _round_up(x, m):
    return ((x + m - 1) // m) * m


def masked_sme(inp, target, mask, *, tile_rows=1024, n_split=2):
    """Pallas implementation of Masked_SME.forward. Returns an f32 scalar."""
    assert inp.shape == target.shape == mask.shape
    n = int(inp.size)  # static at trace time; fits int32 for any realistic tensor
    # TODO(synk): if n ever exceeds int32 range, switch the in-kernel element
    # index arithmetic to int64.

    # ---- lane-dense (rows, 128) slab; pad only when strictly needed ----------
    rows = _round_up(pl.cdiv(n, LANE), SUBLANE)
    padded_n = rows * LANE

    def prep(a):
        a = jnp.ravel(a).astype(jnp.float32)
        if padded_n != n:  # at most 1023 zeros; skipped entirely when aligned
            a = jnp.pad(a, (0, padded_n - n))
        return a.reshape(rows, LANE)

    x2, t2, m2 = prep(inp), prep(target), prep(mask)

    # ---- tiling ---------------------------------------------------------------
    tile_rows = max(SUBLANE, (int(tile_rows) // SUBLANE) * SUBLANE)
    tile_rows = min(tile_rows, rows)            # never exceed the array rows
    total_blocks = pl.cdiv(rows, tile_rows)     # row-blocks of the slab
    steps = pl.cdiv(total_blocks, n_split)      # inner ("arbitrary") grid axis
    groups = tile_rows // SUBLANE

    def kernel(x_ref, t_ref, m_ref, num_ref, den_ref):
        j = pl.program_id(1)

        @pl.when(j == 0)
        def _():
            num_ref[...] = jnp.zeros_like(num_ref)
            den_ref[...] = jnp.zeros_like(den_ref)

        # Logical block index; the last split may run past total_blocks — the
        # index_map clamps the DMA in-bounds and the mask below zeroes it out.
        b = pl.program_id(0) * pl.num_programs(1) + j
        row_start = b * tile_rows
        row_iota = lax.broadcasted_iota(jnp.int32, (tile_rows, LANE), 0)
        col_iota = lax.broadcasted_iota(jnp.int32, (tile_rows, LANE), 1)
        elem = (row_start + row_iota) * LANE + col_iota   # global element index
        valid = elem < n

        x = x_ref[...]
        t = t_ref[...]
        m = m_ref[...]

        # divide -> EUP reciprocal + VALU multiply (free slots under HBM bound)
        ratio = (jnp.abs(x - t) + EPS) * pl.reciprocal(jnp.abs(x + t) + EPS,
                                                       approx=False)
        num_c = jnp.where(valid, ratio * m, 0.0)   # mask numerator (garbage-safe)
        den_c = jnp.where(valid, m, 0.0)           # mask mask-sum too

        # vreg-shaped accumulation: (groups, 8, 128) sum over groups is pure
        # VALU vreg adds; the final cross-lane reduce happens once, in the
        # wrapper, on the tiny partials.
        num_ref[...] += num_c.reshape(groups, SUBLANE, LANE).sum(axis=0)
        den_ref[...] += den_c.reshape(groups, SUBLANE, LANE).sum(axis=0)

    def in_map(i, j):
        # Clamp so the DMA always stays in-bounds; over-run blocks are masked.
        return (jnp.minimum(i * steps + j, total_blocks - 1), 0)

    def out_map(i, j):
        return (i, 0)

    num_p, den_p = pl.pallas_call(
        kernel,
        out_shape=(
            jax.ShapeDtypeStruct((n_split * SUBLANE, LANE), jnp.float32),
            jax.ShapeDtypeStruct((n_split * SUBLANE, LANE), jnp.float32),
        ),
        grid_spec=pltpu.PrefetchScalarGridSpec(
            num_scalar_prefetch=0,
            grid=(n_split, steps),
            in_specs=[
                pl.BlockSpec((tile_rows, LANE), in_map),
                pl.BlockSpec((tile_rows, LANE), in_map),
                pl.BlockSpec((tile_rows, LANE), in_map),
            ],
            out_specs=(
                pl.BlockSpec((SUBLANE, LANE), out_map),
                pl.BlockSpec((SUBLANE, LANE), out_map),
            ),
        ),
        compiler_params=pltpu.CompilerParams(
            dimension_semantics=("parallel", "arbitrary"),
        ),
        cost_estimate=pl.CostEstimate(
            flops=10 * n,
            transcendentals=n,
            bytes_accessed=3 * n * 4,
        ),
    )(x2, t2, m2)

    # Tiny final reduction of per-core (8, 128) partials.
    return (jnp.sum(num_p) / jnp.sum(den_p)).astype(jnp.float32)


if __name__ == "__main__":
    key = jax.random.PRNGKey(0)
    k1, k2, k3 = jax.random.split(key, 3)

    # Small NCHW shapes consistent with the module's usage.
    shape = (2, 4, 16, 16)
    x = jax.random.normal(k1, shape, dtype=jnp.float32)
    tgt = jax.random.normal(k2, shape, dtype=jnp.float32)
    mask = (jax.random.uniform(k3, shape) > 0.5).astype(jnp.float32)

    out = masked_sme(x, tgt, mask)
    out = jax.block_until_ready(out)

    # Pure-JAX reference check.
    ref = jnp.sum((jnp.abs(x - tgt) + EPS) / (jnp.abs(x + tgt) + EPS) * mask) / jnp.sum(mask)
    assert jnp.allclose(out, ref, rtol=1e-5, atol=1e-6), (out, ref)

    print("KERNEL_OK")
</pallas_src>

<mosaic_0001>
module attributes {stable_mosaic.version = 11 : i64} {
  func.func @kernel(%arg0: i32, %arg1: i32, %arg2: memref<16x128xf32, #tpu.memory_space<vmem>>, %arg3: memref<16x128xf32, #tpu.memory_space<vmem>>, %arg4: memref<16x128xf32, #tpu.memory_space<vmem>>, %arg5: memref<8x128xf32, #tpu.memory_space<vmem>>, %arg6: memref<8x128xf32, #tpu.memory_space<vmem>>) attributes {dimension_semantics = [#tpu.dimension_semantics<parallel>, #tpu.dimension_semantics<arbitrary>], iteration_bounds = array<i64: 2, 1>, scalar_prefetch = 0 : i64, scratch_operands = 0 : i64, tpu.core_type = #tpu.core_type<tc>, window_params = [{transform_indices = @transform_0, window_bounds = array<i64: 16, 128>}, {transform_indices = @transform_1, window_bounds = array<i64: 16, 128>}, {transform_indices = @transform_2, window_bounds = array<i64: 16, 128>}, {transform_indices = @transform_3, window_bounds = array<i64: 8, 128>}, {transform_indices = @transform_4, window_bounds = array<i64: 8, 128>}]} {
    %c0_i32 = arith.constant 0 : i32
    %0 = arith.cmpi eq, %arg1, %c0_i32 : i32
    %1 = arith.extui %0 : i1 to i32
    %c0_i32_0 = arith.constant 0 : i32
    %2 = arith.cmpi ne, %1, %c0_i32_0 : i32
    scf.if %2 {
      %cst_19 = arith.constant 0.000000e+00 : f32
      %43 = vector.broadcast %cst_19 : f32 to vector<8x128xf32>
      %c0_20 = arith.constant 0 : index
      %c0_21 = arith.constant 0 : index
      %44 = vector.load %arg5[%c0_20, %c0_21] : memref<8x128xf32, #tpu.memory_space<vmem>>, vector<8x128xf32>
      tpu.vector_store %arg5[%c0_20, %c0_21], %43 {strides = array<i32>} : memref<8x128xf32, #tpu.memory_space<vmem>>, vector<8x128xf32>,
      %cst_22 = arith.constant 0.000000e+00 : f32
      %45 = vector.broadcast %cst_22 : f32 to vector<8x128xf32>
      %c0_23 = arith.constant 0 : index
      %c0_24 = arith.constant 0 : index
      %46 = vector.load %arg6[%c0_23, %c0_24] : memref<8x128xf32, #tpu.memory_space<vmem>>, vector<8x128xf32>
      tpu.vector_store %arg6[%c0_23, %c0_24], %45 {strides = array<i32>} : memref<8x128xf32, #tpu.memory_space<vmem>>, vector<8x128xf32>,
    } else {
    }
    %c1_i32 = arith.constant 1 : i32
    %3 = arith.muli %arg0, %c1_i32 : i32
    %4 = arith.addi %3, %arg1 : i32
    %c16_i32 = arith.constant 16 : i32
    %5 = arith.muli %4, %c16_i32 : i32
    %6 = tpu.iota {dimensions = array<i32: 0>} : vector<16x128xi32>
    %7 = tpu.iota {dimensions = array<i32: 1>} : vector<16x128xi32>
    %8 = vector.broadcast %5 : i32 to vector<16x128xi32>
    %9 = arith.addi %8, %6 : vector<16x128xi32>
    %c128_i32 = arith.constant 128 : i32
    %10 = vector.broadcast %c128_i32 : i32 to vector<16x128xi32>
    %11 = arith.muli %9, %10 : vector<16x128xi32>
    %12 = arith.addi %11, %7 : vector<16x128xi32>
    %c2048_i32 = arith.constant 2048 : i32
    %13 = vector.broadcast %c2048_i32 : i32 to vector<16x128xi32>
    %14 = arith.cmpi slt, %12, %13 : vector<16x128xi32>
    %c0 = arith.constant 0 : index
    %c0_1 = arith.constant 0 : index
    %15 = vector.load %arg2[%c0, %c0_1] : memref<16x128xf32, #tpu.memory_space<vmem>>, vector<16x128xf32>
    %c0_2 = arith.constant 0 : index
    %c0_3 = arith.constant 0 : index
    %16 = vector.load %arg3[%c0_2, %c0_3] : memref<16x128xf32, #tpu.memory_space<vmem>>, vector<16x128xf32>
    %c0_4 = arith.constant 0 : index
    %c0_5 = arith.constant 0 : index
    %17 = vector.load %arg4[%c0_4, %c0_5] : memref<16x128xf32, #tpu.memory_space<vmem>>, vector<16x128xf32>
    %18 = arith.subf %15, %16 : vector<16x128xf32>
    %19 = math.absf %18 : vector<16x128xf32>
    %cst = arith.constant 9.99999993E-9 : f32
    %20 = vector.broadcast %cst : f32 to vector<16x128xf32>
    %21 = arith.addf %19, %20 : vector<16x128xf32>
    %22 = arith.addf %15, %16 : vector<16x128xf32>
    %23 = math.absf %22 : vector<16x128xf32>
    %cst_6 = arith.constant 9.99999993E-9 : f32
    %24 = vector.broadcast %cst_6 : f32 to vector<16x128xf32>
    %25 = arith.addf %23, %24 : vector<16x128xf32>
    %26 = tpu.reciprocal %25 : vector<16x128xf32> -> vector<16x128xf32>
    %27 = arith.mulf %21, %26 : vector<16x128xf32>
    %28 = arith.mulf %27, %17 : vector<16x128xf32>
    %cst_7 = arith.constant 0.000000e+00 : f32
    %29 = vector.broadcast %cst_7 : f32 to vector<16x128xf32>
    %30 = arith.select %14, %28, %29 : vector<16x128xi1>, vector<16x128xf32>
    %cst_8 = arith.constant 0.000000e+00 : f32
    %31 = vector.broadcast %cst_8 : f32 to vector<16x128xf32>
    %32 = arith.select %14, %17, %31 : vector<16x128xi1>, vector<16x128xf32>
    %c0_9 = arith.constant 0 : index
    %c0_10 = arith.constant 0 : index
    %33 = vector.load %arg5[%c0_9, %c0_10] : memref<8x128xf32, #tpu.memory_space<vmem>>, vector<8x128xf32>
    %34 = vector.shape_cast %30 : vector<16x128xf32> to vector<2x8x128xf32>
    %cst_11 = arith.constant dense<0.000000e+00> : vector<8x128xf32>
    %35 = vector.multi_reduction <add>, %34, %cst_11 [0] : vector<2x8x128xf32> to vector<8x128xf32>
    %36 = arith.addf %33, %35 : vector<8x128xf32>
    %c0_12 = arith.constant 0 : index
    %c0_13 = arith.constant 0 : index
    %37 = vector.load %arg5[%c0_12, %c0_13] : memref<8x128xf32, #tpu.memory_space<vmem>>, vector<8x128xf32>
    tpu.vector_store %arg5[%c0_12, %c0_13], %36 {strides = array<i32>} : memref<8x128xf32, #tpu.memory_space<vmem>>, vector<8x128xf32>,
    %c0_14 = arith.constant 0 : index
    %c0_15 = arith.constant 0 : index
    %38 = vector.load %arg6[%c0_14, %c0_15] : memref<8x128xf32, #tpu.memory_space<vmem>>, vector<8x128xf32>
    %39 = vector.shape_cast %32 : vector<16x128xf32> to vector<2x8x128xf32>
    %cst_16 = arith.constant dense<0.000000e+00> : vector<8x128xf32>
    %40 = vector.multi_reduction <add>, %39, %cst_16 [0] : vector<2x8x128xf32> to vector<8x128xf32>
    %41 = arith.addf %38, %40 : vector<8x128xf32>
    %c0_17 = arith.constant 0 : index
    %c0_18 = arith.constant 0 : index
    %42 = vector.load %arg6[%c0_17, %c0_18] : memref<8x128xf32, #tpu.memory_space<vmem>>, vector<8x128xf32>
    tpu.vector_store %arg6[%c0_17, %c0_18], %41 {strides = array<i32>} : memref<8x128xf32, #tpu.memory_space<vmem>>, vector<8x128xf32>,
    return
  }
  func.func @transform_0(%arg0: i32, %arg1: i32) -> (i32, i32) {
    %c1_i32 = arith.constant 1 : i32
    %0 = arith.muli %arg0, %c1_i32 : i32
    %1 = arith.addi %0, %arg1 : i32
    %c0_i32 = arith.constant 0 : i32
    %2 = arith.minsi %1, %c0_i32 : i32
    %c0_i32_0 = arith.constant 0 : i32
    %c0_i32_1 = arith.constant 0 : i32
    return %2, %c0_i32_0 : i32, i32
  }
  func.func @transform_1(%arg0: i32, %arg1: i32) -> (i32, i32) {
    %c1_i32 = arith.constant 1 : i32
    %0 = arith.muli %arg0, %c1_i32 : i32
    %1 = arith.addi %0, %arg1 : i32
    %c0_i32 = arith.constant 0 : i32
    %2 = arith.minsi %1, %c0_i32 : i32
    %c0_i32_0 = arith.constant 0 : i32
    %c0_i32_1 = arith.constant 0 : i32
    return %2, %c0_i32_0 : i32, i32
  }
  func.func @transform_2(%arg0: i32, %arg1: i32) -> (i32, i32) {
    %c1_i32 = arith.constant 1 : i32
    %0 = arith.muli %arg0, %c1_i32 : i32
    %1 = arith.addi %0, %arg1 : i32
    %c0_i32 = arith.constant 0 : i32
    %2 = arith.minsi %1, %c0_i32 : i32
    %c0_i32_0 = arith.constant 0 : i32
    %c0_i32_1 = arith.constant 0 : i32
    return %2, %c0_i32_0 : i32, i32
  }
  func.func @transform_3(%arg0: i32, %arg1: i32) -> (i32, i32) {
    %c0_i32 = arith.constant 0 : i32
    %c0_i32_0 = arith.constant 0 : i32
    return %arg0, %c0_i32 : i32, i32
  }
  func.func @transform_4(%arg0: i32, %arg1: i32) -> (i32, i32) {
    %c0_i32 = arith.constant 0 : i32
    %c0_i32_0 = arith.constant 0 : i32
    return %arg0, %c0_i32 : i32, i32
  }
}

</mosaic_0001>

<llo_original>
// kernel: tpu_custom_call.1
$region0: #{tpu_custom_call.1}
  #allocation0 [shape = 'u32[]', space=smem, size = 0x4, offset = 0x4, fixed_abs, tag = 'smem constant byte address 0x4 - core index']
  #allocation1 [shape = 'u32[72,128]{1,0:T(1,128)}', space=vmem, size = 0x9000, scoped, tag = 'internal scratch']
  %s0 = inlined_call_operand.hbm [shape: f32[16,128], index: 0, kind: input, shape index: {}]
  %s1 = inlined_call_operand.hbm [shape: f32[16,128], index: 1, kind: input, shape index: {}]
  %s2 = inlined_call_operand.hbm [shape: f32[16,128], index: 2, kind: input, shape index: {}]
  %s3 = inlined_call_operand.hbm [shape: f32[16,128], index: 3, kind: output, shape index: {0}]
  %s4 = inlined_call_operand.hbm [shape: f32[16,128], index: 4, kind: output, shape index: {1}]
  %5 = xla_tuple %s3, %s4
  %s6 = sld [smem:[#allocation0]]
  $region69: #{tpu_custom_call.1} parent=0
    _
  %s8 = ssub.s32 1, %s6
  %s9 = scalar_select 0, %s8, %s6
  $region1: #{tpu_custom_call.1} parent=0
    #allocation2 [shape = 'u8[16384]{0}', space=vmem, size = 0x4000, scoped, tag = 'input window, operand 0']
    #allocation3 [shape = 's32[2]{0}', space=sflag, size = 0x8, scoped, tag = 'scoped memory for tpu_custom_call.1']
    #allocation4 [shape = 's32[2]{0}', space=sflag, size = 0x8, scoped, tag = 'scoped memory for tpu_custom_call.1']
    #allocation5 [shape = 'u8[16384]{0}', space=vmem, size = 0x4000, scoped, tag = 'input window, operand 1']
    #allocation6 [shape = 's32[2]{0}', space=sflag, size = 0x8, scoped, tag = 'scoped memory for tpu_custom_call.1']
    #allocation7 [shape = 'u8[16384]{0}', space=vmem, size = 0x4000, scoped, tag = 'input window, operand 2']
    #allocation8 [shape = 'u8[8192]{0}', space=vmem, size = 0x2000, scoped, tag = 'output window, operand 0']
    #allocation9 [shape = 'u8[8192]{0}', space=vmem, size = 0x2000, scoped, tag = 'output window, operand 1']
    #allocation10 [shape = 's32[2]{0}', space=sflag, size = 0x8, scoped, tag = 'scoped memory for tpu_custom_call.1']
    %10 = vsyncpa [#allocation3], 0
    %s11 = scalar_lea.sflag [#allocation3], 1
    %12 = vsyncpa %s11, 0
    %13 = vsyncpa [#allocation6], 0
    %s14 = scalar_lea.sflag [#allocation6], 1
    %15 = vsyncpa %s14, 0
    %16 = vsyncpa [#allocation4], 0
    %s17 = scalar_lea.sflag [#allocation4], 1
    %18 = vsyncpa %s17, 0
    %19 = vsyncpa [#allocation10], 0
    %s20 = scalar_lea.sflag [#allocation10], 1
    %21 = vsyncpa %s20, 0
    loop: start=0, step=1, limit=4
    $region2: #{tpu_custom_call.1} parent=1 // loop_pre_header
      _
    $region3: #{tpu_custom_call.1} parent=1 // loop_header
      %s23 = sphi 0, %s27
      %p24 = scmp.ge.s32.totalorder %s23, 4
      %s30 = sphi 0, %s42
      %s31 = sphi 0, %s38
      %s32 = sphi 0, %s30
      %s33 = sphi 0, %s31
      %s34 = sphi 0, %s32
      %s35 = sphi 0, %s33
      %s51 = sphi 0, %s53
      %s54 = sphi 0, %s51
      %s55 = sphi 0, %s54
      %s71 = sphi 0, %s55
      %s83 = sphi 0, %s85
      %s86 = sphi 0, %s83
      %s87 = sphi 0, %s86
      %s103 = sphi 0, %s87
      %s115 = sphi 0, %s117
      %s118 = sphi 0, %s115
      %s119 = sphi 0, %s118
      %s135 = sphi 0, %s119
      %s141 = sphi 0, %s143
      %s144 = sphi 0, %s141
      %s145 = sphi 0, %s144
      %s161 = sphi 0, %s145
      %s167 = sphi 0, %s169
      %s170 = sphi 0, %s167
      %s171 = sphi 0, %s170
      %s187 = sphi 0, %s171
    $region4: #{tpu_custom_call.1} parent=1 // loop_header_branch
      %26 = sbr.rel (%p24) target = $region8
    $region5: #{tpu_custom_call.1} parent=1 // loop_body
      %s28 = ssub.s32 %s23, 1
      %s29 = ssub.s32 %s23, 2
      %s36 = sadd.s32 1, %s31
      %p37 = scmp.ge.s32.totalorder %s36, 1
      %s38 = scalar_select %p37, 0, %s36
      %s39 = sadd.s32 1, %s30
      %s40 = scalar_select %p37, %s39, %s30
      %p41 = scmp.ge.s32.totalorder %s40, 2
      %s42 = scalar_select %p41, 0, %s40
      %s43 = sadd.s32 %s30, %s31
      %p44 = scmp.lt.s32.totalorder %s43, 0
      %s45 = scalar_select %p44, %s43, 0
      %s46 = sadd.s32 %s42, %s38
      %p47 = scmp.lt.s32.totalorder %s46, 0
      %s48 = scalar_select %p47, %s46, 0
      %s49 = ssub.s32 %s45, %s48
      %p50 = scmp.eq.s32.totalorder %s49, 0
      %s52 = sadd.s32 %s51, 1
      %s53 = scalar_select %p50, %s51, %s52
      %p56 = pneg %p50
      %p57 = scmp.eq.s32.totalorder %s23, 1
      %p58 = por %p56, %p57
      %p59 = scmp.ne.s32.totalorder %s51, %s54
      %p60 = scmp.eq.s32.totalorder %s23, 0
      %p61 = por %p59, %p60
      %p62 = scmp.ne.s32.totalorder %s51, %s54
      %p63 = scmp.eq.s32.totalorder %s28, 1
      %p64 = por %p62, %p63
      %p65 = scmp.ne.s32.totalorder %s54, %s55
      %p66 = scmp.eq.s32.totalorder %s28, 0
      %p67 = por %p65, %p66
      %p68 = scmp.ne.s32.totalorder %s54, %s55
      %p69 = scmp.eq.s32.totalorder %s29, 1
      %p70 = por %p68, %p69
      %p72 = scmp.ne.s32.totalorder %s55, %s71
      %p73 = scmp.eq.s32.totalorder %s29, 0
      %p74 = por %p72, %p73
      %s75 = sadd.s32 %s30, %s31
      %p76 = scmp.lt.s32.totalorder %s75, 0
      %s77 = scalar_select %p76, %s75, 0
      %s78 = sadd.s32 %s42, %s38
      %p79 = scmp.lt.s32.totalorder %s78, 0
      %s80 = scalar_select %p79, %s78, 0
      %s81 = ssub.s32 %s77, %s80
      %p82 = scmp.eq.s32.totalorder %s81, 0
      %s84 = sadd.s32 %s83, 1
      %s85 = scalar_select %p82, %s83, %s84
      %p88 = pneg %p82
      %p89 = scmp.eq.s32.totalorder %s23, 1
      %p90 = por %p88, %p89
      %p91 = scmp.ne.s32.totalorder %s83, %s86
      %p92 = scmp.eq.s32.totalorder %s23, 0
      %p93 = por %p91, %p92
      %p94 = scmp.ne.s32.totalorder %s83, %s86
      %p95 = scmp.eq.s32.totalorder %s28, 1
      %p96 = por %p94, %p95
      %p97 = scmp.ne.s32.totalorder %s86, %s87
      %p98 = scmp.eq.s32.totalorder %s28, 0
      %p99 = por %p97, %p98
      %p100 = scmp.ne.s32.totalorder %s86, %s87
      %p101 = scmp.eq.s32.totalorder %s29, 1
      %p102 = por %p100, %p101
      %p104 = scmp.ne.s32.totalorder %s87, %s103
      %p105 = scmp.eq.s32.totalorder %s29, 0
      %p106 = por %p104, %p105
      %s107 = sadd.s32 %s30, %s31
      %p108 = scmp.lt.s32.totalorder %s107, 0
      %s109 = scalar_select %p108, %s107, 0
      %s110 = sadd.s32 %s42, %s38
      %p111 = scmp.lt.s32.totalorder %s110, 0
      %s112 = scalar_select %p111, %s110, 0
      %s113 = ssub.s32 %s109, %s112
      %p114 = scmp.eq.s32.totalorder %s113, 0
      %s116 = sadd.s32 %s115, 1
      %s117 = scalar_select %p114, %s115, %s116
      %p120 = pneg %p114
      %p121 = scmp.eq.s32.totalorder %s23, 1
      %p122 = por %p120, %p121
      %p123 = scmp.ne.s32.totalorder %s115, %s118
      %p124 = scmp.eq.s32.totalorder %s23, 0
      %p125 = por %p123, %p124
      %p126 = scmp.ne.s32.totalorder %s115, %s118
      %p127 = scmp.eq.s32.totalorder %s28, 1
      %p128 = por %p126, %p127
      %p129 = scmp.ne.s32.totalorder %s118, %s119
      %p130 = scmp.eq.s32.totalorder %s28, 0
      %p131 = por %p129, %p130
      %p132 = scmp.ne.s32.totalorder %s118, %s119
      %p133 = scmp.eq.s32.totalorder %s29, 1
      %p134 = por %p132, %p133
      %p136 = scmp.ne.s32.totalorder %s119, %s135
      %p137 = scmp.eq.s32.totalorder %s29, 0
      %p138 = por %p136, %p137
      %s139 = ssub.s32 %s30, %s42
      %p140 = scmp.eq.s32.totalorder %s139, 0
      %s142 = sadd.s32 %s141, 1
      %s143 = scalar_select %p140, %s141, %s142
      %p146 = pneg %p140
      %p147 = scmp.eq.s32.totalorder %s23, 1
      %p148 = por %p146, %p147
      %p149 = scmp.ne.s32.totalorder %s141, %s144
      %p150 = scmp.eq.s32.totalorder %s23, 0
      %p151 = por %p149, %p150
      %p152 = scmp.ne.s32.totalorder %s141, %s144
      %p153 = scmp.eq.s32.totalorder %s28, 1
      %p154 = por %p152, %p153
      %p155 = scmp.ne.s32.totalorder %s144, %s145
      %p156 = scmp.eq.s32.totalorder %s28, 0
      %p157 = por %p155, %p156
      %p158 = scmp.ne.s32.totalorder %s144, %s145
      %p159 = scmp.eq.s32.totalorder %s29, 1
      %p160 = por %p158, %p159
      %p162 = scmp.ne.s32.totalorder %s145, %s161
      %p163 = scmp.eq.s32.totalorder %s29, 0
      %p164 = por %p162, %p163
      %s165 = ssub.s32 %s30, %s42
      %p166 = scmp.eq.s32.totalorder %s165, 0
      %s168 = sadd.s32 %s167, 1
      %s169 = scalar_select %p166, %s167, %s168
      %p172 = pneg %p166
      %p173 = scmp.eq.s32.totalorder %s23, 1
      %p174 = por %p172, %p173
      %p175 = scmp.ne.s32.totalorder %s167, %s170
      %p176 = scmp.eq.s32.totalorder %s23, 0
      %p177 = por %p175, %p176
      %p178 = scmp.ne.s32.totalorder %s167, %s170
      %p179 = scmp.eq.s32.totalorder %s28, 1
      %p180 = por %p178, %p179
      %p181 = scmp.ne.s32.totalorder %s170, %s171
      %p182 = scmp.eq.s32.totalorder %s28, 0
      %p183 = por %p181, %p182
      %p184 = scmp.ne.s32.totalorder %s170, %s171
      %p185 = scmp.eq.s32.totalorder %s29, 1
      %p186 = por %p184, %p185
      %p188 = scmp.ne.s32.totalorder %s171, %s187
      %p189 = scmp.eq.s32.totalorder %s29, 0
      %p190 = por %p188, %p189
      %p191 = scmp.le.s32.totalorder 1, %s23
      %p192 = scmp.lt.s32.totalorder %s23, 3
      %p193 = pnand %p191, %p192
      %p194 = pneg %p193
      // Predicated region
      $region9: #{tpu_custom_call.1} parent=5 // pred_check
        _
      $region10: #{tpu_custom_call.1} parent=5 // pred_check_branch
        %196 = sbr.rel (%p193) target = $region12
      $region11: #{tpu_custom_call.1} parent=5 // pred_region
        %s197 = ssub.s32 %s23, 1
      $region12: #{tpu_custom_call.1} parent=5 // pred_fallthru
        _
      %p198 = scmp.lt.s32.totalorder %s23, 2
      // Predicated region
      $region13: #{tpu_custom_call.1} parent=5 // pred_check
        %p199 = pneg %p198
      $region14: #{tpu_custom_call.1} parent=5 // pred_check_branch
        %201 = sbr.rel (%p199) target = $region16
      $region15: #{tpu_custom_call.1} parent=5 // pred_region
        // Predicated region
        $region17: #{tpu_custom_call.1} parent=15 // pred_check
          %p202 = pneg %p61
        $region18: #{tpu_custom_call.1} parent=15 // pred_check_branch
          %204 = sbr.rel (%p202) target = $region20
        $region19: #{tpu_custom_call.1} parent=15 // pred_region
          %s205 = sand.u32 %s51, 1
          %s206 = scalar_lea.sflag [#allocation3], %s205
          %s207 = sand.u32 %s51, 1
          %s208 = smul.addr %s207, 16
          %s209 = scalar_lea.vmem [#allocation2], %s208
          %s210 = sadd.s32 %s30, %s31
          %p211 = scmp.lt.s32.totalorder %s210, 0
          %s212 = scalar_select %p211, %s210, 0
          %s213 = smul.u32 2, %s212
          %215 = vsyncadd %s206, 0
          %s216 = smul.addr %s213, 8
          %s217 = scalar_lea.hbm %s0, %s216
          %s218 = sshll.u32 %s217, 4
          %s219 = int_to_ptr.hbm [resolvable:$true] %s218
          %s220 = sshll.u32 %s209, 4
          %s221 = int_to_ptr.vmem [resolvable:$true] %s220
          %226 = dma.hbm_to_vmem [thread:$0]  %s219, 256, %s221, %s206, 128, 128, 8
        $region20: #{tpu_custom_call.1} parent=15 // pred_fallthru
          _
        // Predicated region
        $region21: #{tpu_custom_call.1} parent=15 // pred_check
          %p227 = pneg %p93
        $region22: #{tpu_custom_call.1} parent=15 // pred_check_branch
          %229 = sbr.rel (%p227) target = $region24
        $region23: #{tpu_custom_call.1} parent=15 // pred_region
          %s230 = sand.u32 %s23, 1
          %s231 = scalar_lea.sflag [#allocation6], %s230
          %s232 = sand.u32 %s83, 1
          %s233 = smul.addr %s232, 16
          %s234 = scalar_lea.vmem [#allocation5], %s233
          %s235 = sadd.s32 %s30, %s31
          %p236 = scmp.lt.s32.totalorder %s235, 0
          %s237 = scalar_select %p236, %s235, 0
          %s238 = smul.u32 2, %s237
          %240 = vsyncadd %s231, 0
          %s241 = smul.addr %s238, 8
          %s242 = scalar_lea.hbm %s1, %s241
          %s243 = sshll.u32 %s242, 4
          %s244 = int_to_ptr.hbm [resolvable:$true] %s243
          %s245 = sshll.u32 %s234, 4
          %s246 = int_to_ptr.vmem [resolvable:$true] %s245
          %251 = dma.hbm_to_vmem [thread:$0]  %s244, 256, %s246, %s231, 128, 128, 8
        $region24: #{tpu_custom_call.1} parent=15 // pred_fallthru
          _
        // Predicated region
        $region25: #{tpu_custom_call.1} parent=15 // pred_check
          %p252 = pneg %p125
        $region26: #{tpu_custom_call.1} parent=15 // pred_check_branch
          %254 = sbr.rel (%p252) target = $region28
        $region27: #{tpu_custom_call.1} parent=15 // pred_region
          %s255 = sand.u32 %s23, 1
          %s256 = scalar_lea.sflag [#allocation6], %s255
          %s257 = sand.u32 %s115, 1
          %s258 = smul.addr %s257, 16
          %s259 = scalar_lea.vmem [#allocation7], %s258
          %s260 = sadd.s32 %s30, %s31
          %p261 = scmp.lt.s32.totalorder %s260, 0
          %s262 = scalar_select %p261, %s260, 0
          %s263 = smul.u32 2, %s262
          %265 = vsyncadd %s256, 0
          %s266 = smul.addr %s263, 8
          %s267 = scalar_lea.hbm %s2, %s266
          %s268 = sshll.u32 %s267, 4
          %s269 = int_to_ptr.hbm [resolvable:$true] %s268
          %s270 = sshll.u32 %s259, 4
          %s271 = int_to_ptr.vmem [resolvable:$true] %s270
          %276 = dma.hbm_to_vmem [thread:$0]  %s269, 256, %s271, %s256, 128, 128, 8
        $region28: #{tpu_custom_call.1} parent=15 // pred_fallthru
          _
      $region16: #{tpu_custom_call.1} parent=5 // pred_fallthru
        _
      %p277 = scmp.le.s32.totalorder 1, %s23
      %p278 = scmp.lt.s32.totalorder %s23, 3
      %p279 = pnand %p277, %p278
      %p280 = pneg %p279
      // Predicated region
      $region29: #{tpu_custom_call.1} parent=5 // pred_check
        _
      $region30: #{tpu_custom_call.1} parent=5 // pred_check_branch
        %282 = sbr.rel (%p279) target = $region32
      $region31: #{tpu_custom_call.1} parent=5 // pred_region
        %s283 = ssub.s32 %s23, 1
        %s284 = sand.u32 %s54, 1
        %s285 = scalar_lea.sflag [#allocation3], %s284
        %s286 = sand.u32 %s54, 1
        %s287 = smul.addr %s286, 16
        %s288 = scalar_lea.vmem [#allocation2], %s287
        // Predicated region
        $region33: #{tpu_custom_call.1} parent=31 // pred_check
          %p289 = pneg %p67
        $region34: #{tpu_custom_call.1} parent=31 // pred_check_branch
          %291 = sbr.rel (%p289) target = $region36
        $region35: #{tpu_custom_call.1} parent=31 // pred_region
          %293 = dma.done %s285, 256
        $region36: #{tpu_custom_call.1} parent=31 // pred_fallthru
          _
        %s294 = sand.u32 %s28, 1
        %s295 = scalar_lea.sflag [#allocation6], %s294
        %s296 = sand.u32 %s86, 1
        %s297 = smul.addr %s296, 16
        %s298 = scalar_lea.vmem [#allocation5], %s297
        // Predicated region
        $region37: #{tpu_custom_call.1} parent=31 // pred_check
          %p299 = pneg %p99
        $region38: #{tpu_custom_call.1} parent=31 // pred_check_branch
          %301 = sbr.rel (%p299) target = $region40
        $region39: #{tpu_custom_call.1} parent=31 // pred_region
          %303 = dma.done %s295, 256
        $region40: #{tpu_custom_call.1} parent=31 // pred_fallthru
          _
        %s304 = sand.u32 %s28, 1
        %s305 = scalar_lea.sflag [#allocation6], %s304
        %s306 = sand.u32 %s118, 1
        %s307 = smul.addr %s306, 16
        %s308 = scalar_lea.vmem [#allocation7], %s307
        // Predicated region
        $region41: #{tpu_custom_call.1} parent=31 // pred_check
          %p309 = pneg %p131
        $region42: #{tpu_custom_call.1} parent=31 // pred_check_branch
          %311 = sbr.rel (%p309) target = $region44
        $region43: #{tpu_custom_call.1} parent=31 // pred_region
          %313 = dma.done %s305, 256
        $region44: #{tpu_custom_call.1} parent=31 // pred_fallthru
          _
        %s314 = sand.u32 %s54, 1
        %s315 = scalar_lea.sflag [#allocation3], %s314
        %s316 = sand.u32 %s54, 1
        %s317 = smul.addr %s316, 16
        %s318 = scalar_lea.vmem [#allocation2], %s317
        %p319 = pneg %p67
        %p320 = pneg %p64
        %s321 = sand.u32 %s28, 1
        %s322 = scalar_lea.sflag [#allocation6], %s321
        %s323 = sand.u32 %s86, 1
        %s324 = smul.addr %s323, 16
        %s325 = scalar_lea.vmem [#allocation5], %s324
        %p326 = pneg %p99
        %p327 = pneg %p96
        %s328 = sand.u32 %s28, 1
        %s329 = scalar_lea.sflag [#allocation6], %s328
        %s330 = sand.u32 %s118, 1
        %s331 = smul.addr %s330, 16
        %s332 = scalar_lea.vmem [#allocation7], %s331
        %p333 = pneg %p131
        %p334 = pneg %p128
        %p335 = pneg %p157
        %p336 = pneg %p154
        %s337 = sand.u32 %s144, 1
        %s338 = scalar_lea.sflag [#allocation4], %s337
        %s339 = sand.u32 %s144, 1
        %s340 = smul.addr %s339, 8
        %s341 = scalar_lea.vmem [#allocation8], %s340
        %p342 = pneg %p183
        %p343 = pneg %p180
        %s344 = sand.u32 %s170, 1
        %s345 = scalar_lea.sflag [#allocation10], %s344
        %s346 = sand.u32 %s170, 1
        %s347 = smul.addr %s346, 8
        %s348 = scalar_lea.vmem [#allocation9], %s347
        %s349 = sadd.s32 %s32, %s33
        %p350 = scmp.lt.s32.totalorder %s349, 0
        %s351 = scalar_select %p350, %s349, 0
        %s352 = smul.u32 2, %s351
        %s353 = sadd.s32 %s32, %s33
        %p354 = scmp.lt.s32.totalorder %s353, 0
        %s355 = scalar_select %p354, %s353, 0
        %s356 = smul.u32 2, %s355
        %s357 = sadd.s32 %s32, %s33
        %p358 = scmp.lt.s32.totalorder %s357, 0
        %s359 = scalar_select %p358, %s357, 0
        %s360 = smul.u32 2, %s359
        %p361 = scmp.eq.s32.totalorder %s33, 0
        // Predicated region
        $region45: #{tpu_custom_call.1} parent=31 // pred_check
          %p362 = pneg %p361
        $region46: #{tpu_custom_call.1} parent=31 // pred_check_branch
          %364 = sbr.rel (%p362) target = $region48
        $region47: #{tpu_custom_call.1} parent=31 // pred_region
          %365 = vst [vmem:[%s341] sm:$0xff] 0.0
          %366 = vst [vmem:[%s348] sm:$0xff] 0.0
        $region48: #{tpu_custom_call.1} parent=31 // pred_fallthru
          _
        %s367 = sadd.s32 %s32, %s33
        %s368 = smul.u32 %s367, 16
        %v369 = vlaneseq
        %v370 = vshrl.u32 %v369, 7
        %v371 = vadd.s32 %v370, 8
        %v372 = vlaneseq
        %v373 = vand.u32 %v372, 127
        %v374 = vstv %s368
        %v375 = vadd.s32 %v374, %v370
        %v376 = vadd.s32 %v374, %v371
        %v377 = vmul.u32 %v375, 128
        %v378 = vmul.u32 %v376, 128
        %v379 = vadd.s32 %v377, %v373
        %v380 = vadd.s32 %v378, %v373
        %vm381 = vcmp.lt.s32.totalorder %v379, 2048
        %vm382 = vcmp.lt.s32.totalorder %v380, 2048
        %v383 = vld [vmem:[%s288] sm:$0xff]
        %v384 = vld [vmem:[%s288 + $0x8] sm:$0xff]
        %v385 = vld [vmem:[%s298] sm:$0xff]
        %v386 = vld [vmem:[%s298 + $0x8] sm:$0xff]
        %v387 = vld [vmem:[%s308] sm:$0xff]
        %v388 = vld [vmem:[%s308 + $0x8] sm:$0xff]
        %v389 = vsub.f32 %v383, %v385
        %v390 = vsub.f32 %v384, %v386
        %v391 = vand.u32 2147483647, %v389
        %v392 = vand.u32 2147483647, %v390
        %v393 = vadd.f32 %v391, 1e-08
        %v394 = vadd.f32 %v392, 1e-08
        %v395 = vadd.f32 %v383, %v385
        %v396 = vadd.f32 %v384, %v386
        %v397 = vand.u32 2147483647, %v395
        %v398 = vand.u32 2147483647, %v396
        %v399 = vadd.f32 %v397, 1e-08
        %v400 = vadd.f32 %v398, 1e-08
        %v401 = vrcp.pop %v399
        %v402 = vmul.f32 %v399, %v401
        %v403 = vsub.f32 1.0, %v402
        %v404 = vmul.f32 %v401, %v403
        %v405 = vadd.f32 %v401, %v404
        %vm406 = vweird.f32 %v399
        %vm407 = vweird.f32 %v401
        %vm408 = vmor %vm406, %vm407
        %v409 = vsel %vm408, %v401, %v405
        %v410 = vand.u32 2147483647, %v399
        %vm411 = vcmp.eq.f32.partialorder %v410, 8.507059e+37
        %v412 = vand.u32 %v399, 2147483648
        %v413 = vor.u32 1.1754944e-38, %v412
        %v414 = vsel %vm411, %v413, %v409
        %v415 = vrcp.pop %v400
        %v416 = vmul.f32 %v400, %v415
        %v417 = vsub.f32 1.0, %v416
        %v418 = vmul.f32 %v415, %v417
        %v419 = vadd.f32 %v415, %v418
        %vm420 = vweird.f32 %v400
        %vm421 = vweird.f32 %v415
        %vm422 = vmor %vm420, %vm421
        %v423 = vsel %vm422, %v415, %v419
        %v424 = vand.u32 2147483647, %v400
        %vm425 = vcmp.eq.f32.partialorder %v424, 8.507059e+37
        %v426 = vand.u32 %v400, 2147483648
        %v427 = vor.u32 1.1754944e-38, %v426
        %v428 = vsel %vm425, %v427, %v423
        %v429 = vmul.f32 %v393, %v414
        %v430 = vmul.f32 %v394, %v428
        %v431 = vmul.f32 %v429, %v387
        %v432 = vmul.f32 %v430, %v388
        %v433 = vsel %vm381, %v431, 0.0
        %v434 = vsel %vm382, %v432, 0.0
        %v435 = vsel %vm381, %v387, 0.0
        %v436 = vsel %vm382, %v388, 0.0
        %v437 = vld [vmem:[%s341] sm:$0xff]
        %v438 = vadd.f32 %v433, %v434
        %v439 = vadd.f32 %v437, %v438
        %440 = vst [vmem:[%s341] sm:$0xff] %v439
        %v441 = vld [vmem:[%s348] sm:$0xff]
        %v442 = vadd.f32 %v435, %v436
        %v443 = vadd.f32 %v441, %v442
        %444 = vst [vmem:[%s348] sm:$0xff] %v443
        %s445 = sand.u32 %s144, 1
        %s446 = scalar_lea.sflag [#allocation4], %s445
        %s447 = sand.u32 %s144, 1
        %s448 = smul.addr %s447, 8
        %s449 = scalar_lea.vmem [#allocation8], %s448
        %s450 = sand.u32 %s170, 1
        %s451 = scalar_lea.sflag [#allocation10], %s450
        %s452 = sand.u32 %s170, 1
        %s453 = smul.addr %s452, 8
        %s454 = scalar_lea.vmem [#allocation9], %s453
        // Predicated region
        $region49: #{tpu_custom_call.1} parent=31 // pred_check
          %p455 = pneg %p154
        $region50: #{tpu_custom_call.1} parent=31 // pred_check_branch
          %457 = sbr.rel (%p455) target = $region52
        $region51: #{tpu_custom_call.1} parent=31 // pred_region
          %459 = vsyncadd %s446, 0
          %s460 = smul.addr %s32, 8
          %s461 = scalar_lea.hbm %s3, %s460
          %s463 = sshll.u32 %s449, 4
          %s464 = int_to_ptr.vmem [resolvable:$true] %s463
          %s465 = sshll.u32 %s461, 4
          %s466 = int_to_ptr.hbm [resolvable:$true] %s465
          %468 = dma.vmem_to_hbm [thread:$0]  %s464, 128, %s466, %s446
        $region52: #{tpu_custom_call.1} parent=31 // pred_fallthru
          _
        // Predicated region
        $region53: #{tpu_custom_call.1} parent=31 // pred_check
          %p469 = pneg %p180
        $region54: #{tpu_custom_call.1} parent=31 // pred_check_branch
          %471 = sbr.rel (%p469) target = $region56
        $region55: #{tpu_custom_call.1} parent=31 // pred_region
          %473 = vsyncadd %s451, 0
          %s474 = smul.addr %s32, 8
          %s475 = scalar_lea.hbm %s4, %s474
          %s477 = sshll.u32 %s454, 4
          %s478 = int_to_ptr.vmem [resolvable:$true] %s477
          %s479 = sshll.u32 %s475, 4
          %s480 = int_to_ptr.hbm [resolvable:$true] %s479
          %482 = dma.vmem_to_hbm [thread:$0]  %s478, 128, %s480, %s451
        $region56: #{tpu_custom_call.1} parent=31 // pred_fallthru
          _
      $region32: #{tpu_custom_call.1} parent=5 // pred_fallthru
        _
      %p483 = scmp.le.s32.totalorder 2, %s23
      // Predicated region
      $region57: #{tpu_custom_call.1} parent=5 // pred_check
        %p484 = pneg %p483
      $region58: #{tpu_custom_call.1} parent=5 // pred_check_branch
        %486 = sbr.rel (%p484) target = $region60
      $region59: #{tpu_custom_call.1} parent=5 // pred_region
        %s487 = ssub.s32 %s23, 2
        // Predicated region
        $region61: #{tpu_custom_call.1} parent=59 // pred_check
          %p488 = pneg %p160
        $region62: #{tpu_custom_call.1} parent=59 // pred_check_branch
          %490 = sbr.rel (%p488) target = $region64
        $region63: #{tpu_custom_call.1} parent=59 // pred_region
          %s491 = sand.u32 %s145, 1
          %s492 = scalar_lea.sflag [#allocation4], %s491
          %s493 = sand.u32 %s145, 1
          %s494 = smul.addr %s493, 8
          %s495 = scalar_lea.vmem [#allocation8], %s494
          %497 = dma.done %s492, 128
        $region64: #{tpu_custom_call.1} parent=59 // pred_fallthru
          _
        // Predicated region
        $region65: #{tpu_custom_call.1} parent=59 // pred_check
          %p498 = pneg %p186
        $region66: #{tpu_custom_call.1} parent=59 // pred_check_branch
          %500 = sbr.rel (%p498) target = $region68
        $region67: #{tpu_custom_call.1} parent=59 // pred_region
          %s501 = sand.u32 %s171, 1
          %s502 = scalar_lea.sflag [#allocation10], %s501
          %s503 = sand.u32 %s171, 1
          %s504 = smul.addr %s503, 8
          %s505 = scalar_lea.vmem [#allocation9], %s504
          %507 = dma.done %s502, 128
        $region68: #{tpu_custom_call.1} parent=59 // pred_fallthru
          _
      $region60: #{tpu_custom_call.1} parent=5 // pred_fallthru
        _
    $region6: #{tpu_custom_call.1} parent=1 // loop_footer
      %s27 = sadd.s32 1, %s23
    $region7: #{tpu_custom_call.1} parent=1 // loop_footer_branch
      %22 = sbr.rel target = $region3
    $region8: #{tpu_custom_call.1} parent=1 // loop_exit
      _
    %508 = vsyncpa [#allocation3], 1
    %s509 = scalar_lea.sflag [#allocation3], 1
    %510 = vsyncpa %s509, 1
    %511 = vsyncpa [#allocation6], 1
    %s512 = scalar_lea.sflag [#allocation6], 1
    %513 = vsyncpa %s512, 1
    %514 = vsyncpa [#allocation4], 1
    %s515 = scalar_lea.sflag [#allocation4], 1
    %516 = vsyncpa %s515, 1
    %517 = vsyncpa [#allocation10], 1
    %s518 = scalar_lea.sflag [#allocation10], 1
    %519 = vsyncpa %s518, 1

</llo_original>
